<compile_context>
chip_gen: v5e
topology: v5e:2x2
jax: 0.10.0
libtpu: 0.0.40
codegen_flags: <defaults>
</compile_context>

<pallas_src>
import math

import jax
import jax.numpy as jnp
from jax.experimental import pallas as pl
from jax.experimental.pallas import tpu as pltpu

_LOG_10000 = math.log(10000.0)
_HALF_PI = math.pi / 2.0


# ---------------------------------------------------------------------------
# Kernels
# ---------------------------------------------------------------------------
def _pe_synth_kernel(x_ref, o_ref):
    """x_ref/o_ref: (TS, D) tile of one batch element. pe is generated in-kernel."""
    ts, d = x_ref.shape
    pos0 = pl.program_id(1) * ts  # global row offset of this S-tile

    # Row positions (TS, 1) and column indices (1, D).
    pos = (pos0 + jax.lax.broadcasted_iota(jnp.int32, (ts, 1), 0)).astype(jnp.float32)
    col = jax.lax.broadcasted_iota(jnp.int32, (1, d), 1)
    odd = jnp.bitwise_and(col, 1)                              # 0 for sin cols, 1 for cos cols

    # div_term for column j uses exponent 2*floor(j/2)  (= j - (j & 1)).
    inv_freq = jnp.exp((col - odd).astype(jnp.float32) * (-_LOG_10000 / d))  # (1, D)

    # cos(x) = sin(x + pi/2): one transcendental per element instead of sin+cos+select.
    phase = odd.astype(jnp.float32) * _HALF_PI                 # (1, D)
    pe = jnp.sin(pos * inv_freq + phase)                       # (TS, D)

    o_ref[...] = x_ref[...] + pe.astype(x_ref.dtype)


def _pe_add_kernel(x_ref, pe_ref, o_ref):
    """Fallback: pe streamed from HBM (tile selected by BlockSpec, no wrapper slice)."""
    o_ref[...] = x_ref[...] + pe_ref[...]


# ---------------------------------------------------------------------------
# Wrappers
# ---------------------------------------------------------------------------
def _pick_tile_s(s: int, d: int, itemsize: int, target_bytes: int = 2 << 20) -> int:
    """Largest S-tile (multiple of 8, <=1024) keeping one block around ~2 MiB."""
    ts = (target_bytes // max(1, d * itemsize)) // 8 * 8
    ts = max(8, min(ts, 1024))
    if ts >= s:
        return s  # full extent is always a legal block dim
    return ts     # strictly smaller: multiple of 8; partial last tile is handled by Pallas


def _compiler_params():
    return pltpu.CompilerParams(
        dimension_semantics=("parallel", "parallel"),
        vmem_limit_bytes=32 * 1024 * 1024,  # explicit; safe on v5e/v6e/v7x
    )


def positional_encoding_forward(x: jnp.ndarray) -> jnp.ndarray:
    """x: (B, S, D). Returns x + pe[:, :S] with pe synthesized inside the kernel."""
    B, S, D = x.shape
    ts = _pick_tile_s(S, D, x.dtype.itemsize)
    grid = (B, pl.cdiv(S, ts))
    return pl.pallas_call(
        _pe_synth_kernel,
        out_shape=jax.ShapeDtypeStruct((B, S, D), x.dtype),
        grid_spec=pltpu.PrefetchScalarGridSpec(
            num_scalar_prefetch=0,
            grid=grid,
            in_specs=[pl.BlockSpec((None, ts, D), lambda b, s: (b, s, 0))],
            out_specs=pl.BlockSpec((None, ts, D), lambda b, s: (b, s, 0)),
        ),
        compiler_params=_compiler_params(),
    )(x)


def positional_encoding_forward_streamed(x: jnp.ndarray, pe: jnp.ndarray) -> jnp.ndarray:
    """Fallback path: x: (B, S, D), pe: (1, max_len, D) passed whole (no wrapper slice)."""
    B, S, D = x.shape
    ts = _pick_tile_s(S, D, x.dtype.itemsize)
    grid = (B, pl.cdiv(S, ts))
    return pl.pallas_call(
        _pe_add_kernel,
        out_shape=jax.ShapeDtypeStruct((B, S, D), x.dtype),
        grid_spec=pltpu.PrefetchScalarGridSpec(
            num_scalar_prefetch=0,
            grid=grid,
            in_specs=[
                pl.BlockSpec((None, ts, D), lambda b, s: (b, s, 0)),  # x tile
                pl.BlockSpec((None, ts, D), lambda b, s: (0, s, 0)),  # pe tile (shared over B)
            ],
            out_specs=pl.BlockSpec((None, ts, D), lambda b, s: (b, s, 0)),
        ),
        compiler_params=_compiler_params(),
    )(x, pe)


def make_positional_encoding(d_model: int, max_len: int = 5000) -> jnp.ndarray:
    """Reference buffer, same math as the PyTorch __init__ (guards odd d_model)."""
    position = jnp.arange(0, max_len, dtype=jnp.float32)[:, None]            # (max_len, 1)
    div_term = jnp.exp(
        jnp.arange(0, d_model, 2, dtype=jnp.float32) * -(_LOG_10000 / d_model)
    )                                                                         # (ceil(d/2),)
    angles = position * div_term                                              # (max_len, ceil(d/2))
    pe = jnp.zeros((max_len, d_model), dtype=jnp.float32)
    pe = pe.at[:, 0::2].set(jnp.sin(angles))
    pe = pe.at[:, 1::2].set(jnp.cos(angles[:, : d_model // 2]))               # odd-d_model safe
    return pe[None, :, :]                                                     # (1, max_len, d_model)


# ---------------------------------------------------------------------------
# Demo / self-check
# ---------------------------------------------------------------------------
if __name__ == "__main__":
    B, S, D = 2, 16, 128   # D = 128 -> lane-dense blocks; small but representative
    max_len = 64           # only needed by the reference / fallback table

    key = jax.random.PRNGKey(0)
    x = jax.random.normal(key, (B, S, D), dtype=jnp.float32)
    pe = make_positional_encoding(D, max_len)

    try:
        out = positional_encoding_forward(x)            # preferred: pe synthesized in-kernel
    except Exception:
        # Fallback if this toolchain lacks in-kernel sin/cos lowering.
        out = positional_encoding_forward_streamed(x, pe)
    out = jax.block_until_ready(out)

    # Reference check (plain JAX, same formula as the PyTorch buffer).
    ref = x + pe[:, :S, :]
    assert out.shape == (B, S, D)
    assert jnp.allclose(out, ref, atol=1e-4, rtol=1e-4), "mismatch vs reference"

    print("KERNEL_OK")
</pallas_src>

<mosaic_0001>
module attributes {stable_mosaic.version = 11 : i64} {
  func.func @_pe_synth_kernel(%arg0: i32, %arg1: i32, %arg2: memref<1x16x128xf32, #tpu.memory_space<vmem>>, %arg3: memref<1x16x128xf32, #tpu.memory_space<vmem>>) attributes {dimension_semantics = [#tpu.dimension_semantics<parallel>, #tpu.dimension_semantics<parallel>], iteration_bounds = array<i64: 2, 1>, scalar_prefetch = 0 : i64, scratch_operands = 0 : i64, tpu.core_type = #tpu.core_type<tc>, window_params = [{transform_indices = @transform_0, window_bounds = array<i64: 1, 16, 128>}, {transform_indices = @transform_1, window_bounds = array<i64: 1, 16, 128>}]} {
    %c16_i32 = arith.constant 16 : i32
    %0 = arith.muli %arg1, %c16_i32 : i32
    %1 = tpu.iota {dimensions = array<i32: 0>} : vector<16x1xi32>
    %2 = vector.broadcast %0 : i32 to vector<16x1xi32>
    %3 = arith.addi %2, %1 : vector<16x1xi32>
    %4 = arith.sitofp %3 : vector<16x1xi32> to vector<16x1xf32>
    %5 = tpu.iota {dimensions = array<i32: 1>} : vector<1x128xi32>
    %c1_i32 = arith.constant 1 : i32
    %6 = vector.broadcast %c1_i32 : i32 to vector<1x128xi32>
    %7 = arith.andi %5, %6 : vector<1x128xi32>
    %8 = arith.subi %5, %7 : vector<1x128xi32>
    %9 = arith.sitofp %8 : vector<1x128xi32> to vector<1x128xf32>
    %cst = arith.constant -0.0719557852 : f32
    %10 = vector.broadcast %cst : f32 to vector<1x128xf32>
    %11 = arith.mulf %9, %10 : vector<1x128xf32>
    %12 = math.exp %11 : vector<1x128xf32>
    %13 = arith.sitofp %7 : vector<1x128xi32> to vector<1x128xf32>
    %cst_0 = arith.constant 1.57079637 : f32
    %14 = vector.broadcast %cst_0 : f32 to vector<1x128xf32>
    %15 = arith.mulf %13, %14 : vector<1x128xf32>
    %16 = vector.broadcast %4 : vector<16x1xf32> to vector<16x128xf32>
    %17 = vector.broadcast %12 : vector<1x128xf32> to vector<16x128xf32>
    %18 = arith.mulf %16, %17 : vector<16x128xf32>
    %19 = vector.broadcast %15 : vector<1x128xf32> to vector<16x128xf32>
    %20 = arith.addf %18, %19 : vector<16x128xf32>
    %21 = math.sin %20 : vector<16x128xf32>
    %c0 = arith.constant 0 : index
    %c0_1 = arith.constant 0 : index
    %c0_2 = arith.constant 0 : index
    %22 = vector.load %arg2[%c0, %c0_1, %c0_2] : memref<1x16x128xf32, #tpu.memory_space<vmem>>, vector<1x16x128xf32>
    %23 = vector.shape_cast %22 : vector<1x16x128xf32> to vector<16x128xf32>
    %24 = arith.addf %23, %21 : vector<16x128xf32>
    %c0_3 = arith.constant 0 : index
    %c0_4 = arith.constant 0 : index
    %c0_5 = arith.constant 0 : index
    %25 = vector.load %arg3[%c0_3, %c0_4, %c0_5] : memref<1x16x128xf32, #tpu.memory_space<vmem>>, vector<1x16x128xf32>
    %26 = vector.shape_cast %25 : vector<1x16x128xf32> to vector<16x128xf32>
    %27 = vector.shape_cast %24 : vector<16x128xf32> to vector<1x16x128xf32>
    tpu.vector_store %arg3[%c0_3, %c0_4, %c0_5], %27 {strides = array<i32>} : memref<1x16x128xf32, #tpu.memory_space<vmem>>, vector<1x16x128xf32>,
    return
  }
  func.func @transform_0(%arg0: i32, %arg1: i32) -> (i32, i32, i32) {
    %c0_i32 = arith.constant 0 : i32
    %c0_i32_0 = arith.constant 0 : i32
    return %arg0, %arg1, %c0_i32 : i32, i32, i32
  }
  func.func @transform_1(%arg0: i32, %arg1: i32) -> (i32, i32, i32) {
    %c0_i32 = arith.constant 0 : i32
    %c0_i32_0 = arith.constant 0 : i32
    return %arg0, %arg1, %c0_i32 : i32, i32, i32
  }
}

module attributes {stable_mosaic.version = 11 : i64} {
  func.func @_pe_add_kernel(%arg0: i32, %arg1: i32, %arg2: memref<1x16x128xf32, #tpu.memory_space<vmem>>, %arg3: memref<1x16x128xf32, #tpu.memory_space<vmem>>, %arg4: memref<1x16x128xf32, #tpu.memory_space<vmem>>) attributes {dimension_semantics = [#tpu.dimension_semantics<parallel>, #tpu.dimension_semantics<parallel>], iteration_bounds = array<i64: 2, 1>, scalar_prefetch = 0 : i64, scratch_operands = 0 : i64, tpu.core_type = #tpu.core_type<tc>, window_params = [{transform_indices = @transform_0, window_bounds = array<i64: 1, 16, 128>}, {transform_indices = @transform_1, window_bounds = array<i64: 1, 16, 128>}, {transform_indices = @transform_2, window_bounds = array<i64: 1, 16, 128>}]} {
    %c0 = arith.constant 0 : index
    %c0_0 = arith.constant 0 : index
    %c0_1 = arith.constant 0 : index
    %0 = vector.load %arg2[%c0, %c0_0, %c0_1] : memref<1x16x128xf32, #tpu.memory_space<vmem>>, vector<1x16x128xf32>
    %1 = vector.shape_cast %0 : vector<1x16x128xf32> to vector<16x128xf32>
    %c0_2 = arith.constant 0 : index
    %c0_3 = arith.constant 0 : index
    %c0_4 = arith.constant 0 : index
    %2 = vector.load %arg3[%c0_2, %c0_3, %c0_4] : memref<1x16x128xf32, #tpu.memory_space<vmem>>, vector<1x16x128xf32>
    %3 = vector.shape_cast %2 : vector<1x16x128xf32> to vector<16x128xf32>
    %4 = arith.addf %1, %3 : vector<16x128xf32>
    %c0_5 = arith.constant 0 : index
    %c0_6 = arith.constant 0 : index
    %c0_7 = arith.constant 0 : index
    %5 = vector.load %arg4[%c0_5, %c0_6, %c0_7] : memref<1x16x128xf32, #tpu.memory_space<vmem>>, vector<1x16x128xf32>
    %6 = vector.shape_cast %5 : vector<1x16x128xf32> to vector<16x128xf32>
    %7 = vector.shape_cast %4 : vector<16x128xf32> to vector<1x16x128xf32>
    tpu.vector_store %arg4[%c0_5, %c0_6, %c0_7], %7 {strides = array<i32>} : memref<1x16x128xf32, #tpu.memory_space<vmem>>, vector<1x16x128xf32>,
    return
  }
  func.func @transform_0(%arg0: i32, %arg1: i32) -> (i32, i32, i32) {
    %c0_i32 = arith.constant 0 : i32
    %c0_i32_0 = arith.constant 0 : i32
    return %arg0, %arg1, %c0_i32 : i32, i32, i32
  }
  func.func @transform_1(%arg0: i32, %arg1: i32) -> (i32, i32, i32) {
    %c0_i32 = arith.constant 0 : i32
    %c0_i32_0 = arith.constant 0 : i32
    %c0_i32_1 = arith.constant 0 : i32
    return %c0_i32, %arg1, %c0_i32_0 : i32, i32, i32
  }
  func.func @transform_2(%arg0: i32, %arg1: i32) -> (i32, i32, i32) {
    %c0_i32 = arith.constant 0 : i32
    %c0_i32_0 = arith.constant 0 : i32
    return %arg0, %arg1, %c0_i32 : i32, i32, i32
  }
}

</mosaic_0001>

<llo_original>
// kernel: tpu_custom_call.1
$region0: #{tpu_custom_call.1}
  #allocation0 [shape = 'u32[]', space=smem, size = 0x4, offset = 0x4, fixed_abs, tag = 'smem constant byte address 0x4 - core index']
  #allocation1 [shape = 'u32[72,128]{1,0:T(1,128)}', space=vmem, size = 0x9000, scoped, tag = 'internal scratch']
  %s0 = inlined_call_operand.hbm [shape: f32[2,16,128], index: 0, kind: input, shape index: {}]
  %s1 = inlined_call_operand.hbm [shape: f32[2,16,128], index: 1, kind: output, shape index: {}]
  %s2 = sld [smem:[#allocation0]]
  $region41: #{tpu_custom_call.1} parent=0
    _
  %s4 = ssub.s32 1, %s2
  %s5 = scalar_select 0, %s4, %s2
  $region1: #{tpu_custom_call.1} parent=0
    #allocation2 [shape = 'u8[16384]{0}', space=vmem, size = 0x4000, scoped, tag = 'input window, operand 0']
    #allocation3 [shape = 's32[2]{0}', space=sflag, size = 0x8, scoped, tag = 'scoped memory for tpu_custom_call.1']
    #allocation4 [shape = 's32[2]{0}', space=sflag, size = 0x8, scoped, tag = 'scoped memory for tpu_custom_call.1']
    #allocation5 [shape = 'u8[16384]{0}', space=vmem, size = 0x4000, scoped, tag = 'output window, operand 0']
    %6 = vsyncpa [#allocation3], 0
    %s7 = scalar_lea.sflag [#allocation3], 1
    %8 = vsyncpa %s7, 0
    %9 = vsyncpa [#allocation4], 0
    %s10 = scalar_lea.sflag [#allocation4], 1
    %11 = vsyncpa %s10, 0
    loop: start=0, step=1, limit=4
    $region2: #{tpu_custom_call.1} parent=1 // loop_pre_header
      _
    $region3: #{tpu_custom_call.1} parent=1 // loop_header
      %s13 = sphi 0, %s17
      %p14 = scmp.ge.s32.totalorder %s13, 4
      %s20 = sphi 0, %s32
      %s21 = sphi 0, %s28
      %s22 = sphi 0, %s20
      %s23 = sphi 0, %s21
      %s24 = sphi 0, %s22
      %s25 = sphi 0, %s23
      %s37 = sphi 0, %s39
      %s40 = sphi 0, %s37
      %s41 = sphi 0, %s40
      %s57 = sphi 0, %s41
      %s65 = sphi 0, %s67
      %s68 = sphi 0, %s65
      %s69 = sphi 0, %s68
      %s85 = sphi 0, %s69
    $region4: #{tpu_custom_call.1} parent=1 // loop_header_branch
      %16 = sbr.rel (%p14) target = $region8
    $region5: #{tpu_custom_call.1} parent=1 // loop_body
      %s18 = ssub.s32 %s13, 1
      %s19 = ssub.s32 %s13, 2
      %s26 = sadd.s32 1, %s21
      %p27 = scmp.ge.s32.totalorder %s26, 1
      %s28 = scalar_select %p27, 0, %s26
      %s29 = sadd.s32 1, %s20
      %s30 = scalar_select %p27, %s29, %s20
      %p31 = scmp.ge.s32.totalorder %s30, 2
      %s32 = scalar_select %p31, 0, %s30
      %s33 = ssub.s32 %s20, %s32
      %s34 = ssub.s32 %s21, %s28
      %s35 = sor.u32 %s33, %s34
      %p36 = scmp.eq.s32.totalorder %s35, 0
      %s38 = sadd.s32 %s37, 1
      %s39 = scalar_select %p36, %s37, %s38
      %p42 = pneg %p36
      %p43 = scmp.eq.s32.totalorder %s13, 1
      %p44 = por %p42, %p43
      %p45 = scmp.ne.s32.totalorder %s37, %s40
      %p46 = scmp.eq.s32.totalorder %s13, 0
      %p47 = por %p45, %p46
      %p48 = scmp.ne.s32.totalorder %s37, %s40
      %p49 = scmp.eq.s32.totalorder %s18, 1
      %p50 = por %p48, %p49
      %p51 = scmp.ne.s32.totalorder %s40, %s41
      %p52 = scmp.eq.s32.totalorder %s18, 0
      %p53 = por %p51, %p52
      %p54 = scmp.ne.s32.totalorder %s40, %s41
      %p55 = scmp.eq.s32.totalorder %s19, 1
      %p56 = por %p54, %p55
      %p58 = scmp.ne.s32.totalorder %s41, %s57
      %p59 = scmp.eq.s32.totalorder %s19, 0
      %p60 = por %p58, %p59
      %s61 = ssub.s32 %s20, %s32
      %s62 = ssub.s32 %s21, %s28
      %s63 = sor.u32 %s61, %s62
      %p64 = scmp.eq.s32.totalorder %s63, 0
      %s66 = sadd.s32 %s65, 1
      %s67 = scalar_select %p64, %s65, %s66
      %p70 = pneg %p64
      %p71 = scmp.eq.s32.totalorder %s13, 1
      %p72 = por %p70, %p71
      %p73 = scmp.ne.s32.totalorder %s65, %s68
      %p74 = scmp.eq.s32.totalorder %s13, 0
      %p75 = por %p73, %p74
      %p76 = scmp.ne.s32.totalorder %s65, %s68
      %p77 = scmp.eq.s32.totalorder %s18, 1
      %p78 = por %p76, %p77
      %p79 = scmp.ne.s32.totalorder %s68, %s69
      %p80 = scmp.eq.s32.totalorder %s18, 0
      %p81 = por %p79, %p80
      %p82 = scmp.ne.s32.totalorder %s68, %s69
      %p83 = scmp.eq.s32.totalorder %s19, 1
      %p84 = por %p82, %p83
      %p86 = scmp.ne.s32.totalorder %s69, %s85
      %p87 = scmp.eq.s32.totalorder %s19, 0
      %p88 = por %p86, %p87
      %p89 = scmp.le.s32.totalorder 1, %s13
      %p90 = scmp.lt.s32.totalorder %s13, 3
      %p91 = pnand %p89, %p90
      %p92 = pneg %p91
      // Predicated region
      $region9: #{tpu_custom_call.1} parent=5 // pred_check
        _
      $region10: #{tpu_custom_call.1} parent=5 // pred_check_branch
        %94 = sbr.rel (%p91) target = $region12
      $region11: #{tpu_custom_call.1} parent=5 // pred_region
        %s95 = ssub.s32 %s13, 1
      $region12: #{tpu_custom_call.1} parent=5 // pred_fallthru
        _
      %p96 = scmp.lt.s32.totalorder %s13, 2
      // Predicated region
      $region13: #{tpu_custom_call.1} parent=5 // pred_check
        %p97 = pneg %p96
      $region14: #{tpu_custom_call.1} parent=5 // pred_check_branch
        %99 = sbr.rel (%p97) target = $region16
      $region15: #{tpu_custom_call.1} parent=5 // pred_region
        // Predicated region
        $region17: #{tpu_custom_call.1} parent=15 // pred_check
          %p100 = pneg %p47
        $region18: #{tpu_custom_call.1} parent=15 // pred_check_branch
          %102 = sbr.rel (%p100) target = $region20
        $region19: #{tpu_custom_call.1} parent=15 // pred_region
          %s103 = sand.u32 %s37, 1
          %s104 = scalar_lea.sflag [#allocation3], %s103
          %s105 = sand.u32 %s37, 1
          %s106 = smul.addr %s105, 16
          %s107 = scalar_lea.vmem [#allocation2], %s106
          %s108 = smul.u32 2, %s21
          %110 = vsyncadd %s104, 0
          %s111 = smul.addr %s20, 2
          %s112 = sadd.s32 %s108, %s111
          %s113 = smul.addr %s112, 8
          %s114 = scalar_lea.hbm %s0, %s113
          %s115 = sshll.u32 %s114, 4
          %s116 = int_to_ptr.hbm [resolvable:$true] %s115
          %s117 = sshll.u32 %s107, 4
          %s118 = int_to_ptr.vmem [resolvable:$true] %s117
          %123 = dma.hbm_to_vmem [thread:$0]  %s116, 256, %s118, %s104, 128, 128, 8
        $region20: #{tpu_custom_call.1} parent=15 // pred_fallthru
          _
      $region16: #{tpu_custom_call.1} parent=5 // pred_fallthru
        _
      %p124 = scmp.le.s32.totalorder 1, %s13
      %p125 = scmp.lt.s32.totalorder %s13, 3
      %p126 = pnand %p124, %p125
      %p127 = pneg %p126
      // Predicated region
      $region21: #{tpu_custom_call.1} parent=5 // pred_check
        _
      $region22: #{tpu_custom_call.1} parent=5 // pred_check_branch
        %129 = sbr.rel (%p126) target = $region24
      $region23: #{tpu_custom_call.1} parent=5 // pred_region
        %s130 = ssub.s32 %s13, 1
        %s131 = sand.u32 %s40, 1
        %s132 = scalar_lea.sflag [#allocation3], %s131
        %s133 = sand.u32 %s40, 1
        %s134 = smul.addr %s133, 16
        %s135 = scalar_lea.vmem [#allocation2], %s134
        // Predicated region
        $region25: #{tpu_custom_call.1} parent=23 // pred_check
          %p136 = pneg %p53
        $region26: #{tpu_custom_call.1} parent=23 // pred_check_branch
          %138 = sbr.rel (%p136) target = $region28
        $region27: #{tpu_custom_call.1} parent=23 // pred_region
          %140 = dma.done %s132, 256
        $region28: #{tpu_custom_call.1} parent=23 // pred_fallthru
          _
        %s141 = sand.u32 %s40, 1
        %s142 = scalar_lea.sflag [#allocation3], %s141
        %s143 = sand.u32 %s40, 1
        %s144 = smul.addr %s143, 16
        %s145 = scalar_lea.vmem [#allocation2], %s144
        %p146 = pneg %p53
        %p147 = pneg %p50
        %p148 = pneg %p81
        %p149 = pneg %p78
        %s150 = sand.u32 %s68, 1
        %s151 = scalar_lea.sflag [#allocation4], %s150
        %s152 = sand.u32 %s68, 1
        %s153 = smul.addr %s152, 16
        %s154 = scalar_lea.vmem [#allocation5], %s153
        %s155 = smul.u32 2, %s23
        %s156 = smul.u32 2, %s23
        %s157 = smul.u32 %s23, 16
        %v158 = vlaneseq
        %v159 = vshrl.u32 %v158, 7
        %v160 = vadd.s32 %v159, 8
        %v161 = vstv %s157
        %v162 = vadd.s32 %v161, %v159
        %v163 = vadd.s32 %v161, %v160
        %v164 = vcvt.s32.f32 %v162
        %v165 = vcvt.s32.f32 %v163
        %v166 = vlaneseq
        %v167 = vand.u32 %v166, 127
        %v168 = vand.u32 %v167, 1
        %v169 = vsub.s32 %v167, %v168
        %v170 = vcvt.s32.f32 %v169
        %v171 = vmul.f32 %v170, -0.071955785
        %v172 = vmul.f32 %v171, 1.442695
        %v173 = vpow.pop %v172
        %v174 = vcvt.s32.f32 %v168
        %v175 = vmul.f32 %v174, 1.5707964
        %v176 = vmul.f32 %v164, %v173
        %v177 = vmul.f32 %v165, %v173
        %v178 = vadd.f32 %v176, %v175
        %v179 = vadd.f32 %v177, %v175
        %v180 = vand.u32 2147483647, %v178
        %vm181 = vcmp.le.f32.partialorder %v180, 0.7853982
        %vm182 = vcmp.lt.s32.totalorder %v178, 0
        %v183 = vand.u32 %v178, 2139095040
        %v184 = vshrl.u32 %v183, 23
        %v185 = vsub.s32 %v184, 127
        %v186 = vand.u32 2147483647, %v178
        %v187 = vand.u32 %v186, 8388607
        %v188 = vor.u32 %v187, 8388608
        %v189 = vsub.s32 0, %v188
        %v190 = vadd.s32 %v185, 1
        %vm191 = vcmp.gt.s32.totalorder %v190, 0
        %v192 = vsel %vm191, %v190, 0
        %v193 = vshrl.u32 %v192, 5
        %v194 = vand.u32 %v192, 31
        %v195 = vsub.s32 32, %v194
        %v196 = vshrl.u32 683565275, %v195
        %v197 = vshll.u32 683565275, %v194
        %v198 = vshrl.u32 2475754826, %v195
        %v199 = vor.u32 %v197, %v198
        %v200 = vshll.u32 2475754826, %v194
        %v201 = vshrl.u32 2131351028, %v195
        %v202 = vor.u32 %v200, %v201
        %v203 = vshll.u32 2131351028, %v194
        %v204 = vshrl.u32 2102212464, %v195
        %v205 = vor.u32 %v203, %v204
        %v206 = vshll.u32 2102212464, %v194
        %v207 = vshrl.u32 920167782, %v195
        %v208 = vor.u32 %v206, %v207
        %v209 = vshll.u32 920167782, %v194
        %v210 = vshrl.u32 1326507024, %v195
        %v211 = vor.u32 %v209, %v210
        %vm212 = vcmp.lt.s32.totalorder %v193, 1
        %vm213 = vcmp.lt.s32.totalorder %v193, 2
        %vm214 = vcmp.lt.s32.totalorder %v193, 3
        %vm215 = vcmp.lt.s32.totalorder %v193, 4
        %v216 = vsel %vm212, %v196, %v199
        %v217 = vsel %vm215, %v205, 2102212464
        %v218 = vsel %vm214, %v202, %v217
        %v219 = vsel %vm213, %v216, %v218
        %v220 = vsel %vm212, %v199, %v202
        %v221 = vsel %vm215, %v208, 920167782
        %v222 = vsel %vm214, %v205, %v221
        %v223 = vsel %vm213, %v220, %v222
        %v224 = vsel %vm212, %v202, %v205
        %v225 = vsel %vm215, %v211, 1326507024
        %v226 = vsel %vm214, %v208, %v225
        %v227 = vsel %vm213, %v224, %v226
        %v228 = vshll.u32 %v188, 8
        %v229 = vand.u32 %v228, 65535
        %v230 = vshrl.u32 %v228, 16
        %v231 = vand.u32 %v227, 65535
        %v232 = vshrl.u32 %v227, 16
        %v233 = vmul.u32 %v229, %v231
        %v234 = vmul.u32 %v229, %v232
        %v235 = vmul.u32 %v230, %v231
        %v236 = vmul.u32 %v230, %v232
        %v237 = vshll.u32 %v234, 16
        %v238 = vshrl.u32 %v234, 16
        %v239 = vshll.u32 %v235, 16
        %v240 = vshrl.u32 %v235, 16
        %vm241 = vc.u32 %v233, %v237
        %v242 = vsel %vm241, 1, 0
        %v243 = vadd.s32 %v233, %v237
        %v244 = vadd.s32 %v236, %v242
        %vm245 = vc.u32 %v243, %v239
        %v246 = vsel %vm245, 1, 0
        %v247 = vadd.s32 %v243, %v239
        %v248 = vadd.s32 %v244, %v246
        %v249 = vadd.s32 %v248, %v238
        %v250 = vadd.s32 %v249, %v240
        %v251 = vand.u32 %v228, 65535
        %v252 = vshrl.u32 %v228, 16
        %v253 = vand.u32 %v223, 65535
        %v254 = vshrl.u32 %v223, 16
        %v255 = vmul.u32 %v251, %v253
        %v256 = vmul.u32 %v251, %v254
        %v257 = vmul.u32 %v252, %v253
        %v258 = vmul.u32 %v252, %v254
        %v259 = vshll.u32 %v256, 16
        %v260 = vshrl.u32 %v256, 16
        %v261 = vshll.u32 %v257, 16
        %v262 = vshrl.u32 %v257, 16
        %vm263 = vc.u32 %v255, %v259
        %v264 = vsel %vm263, 1, 0
        %v265 = vadd.s32 %v255, %v259
        %v266 = vadd.s32 %v258, %v264
        %vm267 = vc.u32 %v265, %v261
        %v268 = vsel %vm267, 1, 0
        %v269 = vadd.s32 %v265, %v261
        %v270 = vadd.s32 %v266, %v268
        %v271 = vadd.s32 %v270, %v260
        %v272 = vadd.s32 %v271, %v262
        %v273 = vmul.u32 %v228, %v219
        %v274 = vadd.s32 %v250, %v269
        %vm275 = vc.u32 %v250, %v269
        %v276 = vadd.s32 %v272, 1
        %v277 = vsel %vm275, %v276, %v272
        %v278 = vadd.s32 %v273, %v277
        %v279 = vadd.s32 %v278, 536870912
        %v280 = vshrl.u32 %v279, 30
        %v281 = vshll.u32 %v280, 30
        %v282 = vsub.s32 %v278, %v281
        %vm283 = vcmp.lt.s32.totalorder %v282, 0
        %v284 = vsub.s32 0, %v282
        %v285 = vsel %vm283, %v284, %v282
        %v286 = vclz %v285
        %v287 = vsub.s32 %v286, 2
        %vm288 = vcmp.gt.s32.totalorder 0, %v287
        %v289 = vsel %vm288, 0, %v287
        %v290 = vsub.s32 32, %v289
        %v291 = vshll.u32 %v282, %v289
        %v292 = vshrl.u32 %v274, %v290
        %v293 = vor.u32 %v291, %v292
        %v294 = vsub.s32 4294967266, %v289
        %v295 = vadd.s32 %v294, 127
        %v296 = vshll.u32 %v295, 23
        %v297 = vor.u32 4788187, %v296
        %v298 = vand.u32 2147483647, %v297
        %v300 = vcvt.s32.f32 %v293
        %v301 = vmul.f32 %v300, %v298
        %v302 = vxor.u32 %v301, 2147483648
        %v303 = vsel %vm182, %v302, %v301
        %v304 = vsub.s32 4, %v280
        %v305 = vsel %vm182, %v304, %v280
        %v306 = vsel %vm181, %v178, %v303
        %v307 = vsel %vm181, 0, %v305
        %v308 = vmul.f32 %v306, %v306
        %v309 = vmul.f32 %v308, -0.001358992
        %v310 = vadd.f32 %v309, 0.041655596
        %v311 = vmul.f32 %v308, %v310
        %v312 = vadd.f32 %v311, -0.4999988
        %v313 = vmul.f32 %v308, %v312
        %v314 = vadd.f32 1.0, %v313
        %v315 = vmul.f32 %v306, %v306
        %v316 = vmul.f32 %v315, -0.00019511016
        %v317 = vadd.f32 %v316, 0.008332121
        %v318 = vmul.f32 %v315, %v317
        %v319 = vadd.f32 %v318, -0.16666654
        %v320 = vmul.f32 %v315, %v319
        %v321 = vadd.f32 %v320, 1.0
        %v322 = vmul.f32 %v321, %v306
        %vm323 = vweird.f32 %v178
        %v324 = vadd.s32 %v307, 3
        %v325 = vand.u32 %v324, 3
        %vm326 = vcmp.lt.s32.totalorder %v325, 2
        %vm327 = vcmp.eq.s32.totalorder %v325, 0
        %v328 = vxor.u32 %v322, 2147483648
        %v329 = vsel %vm327, %v314, %v328
        %vm330 = vcmp.eq.s32.totalorder %v325, 2
        %v331 = vxor.u32 %v314, 2147483648
        %v332 = vsel %vm330, %v331, %v322
        %v333 = vsel %vm326, %v329, %v332
        %v334 = vsel %vm323, nan, %v333
        %v335 = vand.u32 2147483647, %v179
        %vm336 = vcmp.le.f32.partialorder %v335, 0.7853982
        %vm337 = vcmp.lt.s32.totalorder %v179, 0
        %v338 = vand.u32 %v179, 2139095040
        %v339 = vshrl.u32 %v338, 23
        %v340 = vsub.s32 %v339, 127
        %v341 = vand.u32 2147483647, %v179
        %v342 = vand.u32 %v341, 8388607
        %v343 = vor.u32 %v342, 8388608
        %v344 = vsub.s32 0, %v343
        %v345 = vadd.s32 %v340, 1
        %vm346 = vcmp.gt.s32.totalorder %v345, 0
        %v347 = vsel %vm346, %v345, 0
        %v348 = vshrl.u32 %v347, 5
        %v349 = vand.u32 %v347, 31
        %v350 = vsub.s32 32, %v349
        %v351 = vshrl.u32 683565275, %v350
        %v352 = vshll.u32 683565275, %v349
        %v353 = vshrl.u32 2475754826, %v350
        %v354 = vor.u32 %v352, %v353
        %v355 = vshll.u32 2475754826, %v349
        %v356 = vshrl.u32 2131351028, %v350
        %v357 = vor.u32 %v355, %v356
        %v358 = vshll.u32 2131351028, %v349
        %v359 = vshrl.u32 2102212464, %v350
        %v360 = vor.u32 %v358, %v359
        %v361 = vshll.u32 2102212464, %v349
        %v362 = vshrl.u32 920167782, %v350
        %v363 = vor.u32 %v361, %v362
        %v364 = vshll.u32 920167782, %v349
        %v365 = vshrl.u32 1326507024, %v350
        %v366 = vor.u32 %v364, %v365
        %vm367 = vcmp.lt.s32.totalorder %v348, 1
        %vm368 = vcmp.lt.s32.totalorder %v348, 2
        %vm369 = vcmp.lt.s32.totalorder %v348, 3
        %vm370 = vcmp.lt.s32.totalorder %v348, 4
        %v371 = vsel %vm367, %v351, %v354
        %v372 = vsel %vm370, %v360, 2102212464
        %v373 = vsel %vm369, %v357, %v372
        %v374 = vsel %vm368, %v371, %v373
        %v375 = vsel %vm367, %v354, %v357
        %v376 = vsel %vm370, %v363, 920167782
        %v377 = vsel %vm369, %v360, %v376
        %v378 = vsel %vm368, %v375, %v377
        %v379 = vsel %vm367, %v357, %v360
        %v380 = vsel %vm370, %v366, 1326507024
        %v381 = vsel %vm369, %v363, %v380
        %v382 = vsel %vm368, %v379, %v381
        %v383 = vshll.u32 %v343, 8
        %v384 = vand.u32 %v383, 65535
        %v385 = vshrl.u32 %v383, 16
        %v386 = vand.u32 %v382, 65535
        %v387 = vshrl.u32 %v382, 16
        %v388 = vmul.u32 %v384, %v386
        %v389 = vmul.u32 %v384, %v387
        %v390 = vmul.u32 %v385, %v386
        %v391 = vmul.u32 %v385, %v387
        %v392 = vshll.u32 %v389, 16
        %v393 = vshrl.u32 %v389, 16
        %v394 = vshll.u32 %v390, 16
        %v395 = vshrl.u32 %v390, 16
        %vm396 = vc.u32 %v388, %v392
        %v397 = vsel %vm396, 1, 0
        %v398 = vadd.s32 %v388, %v392
        %v399 = vadd.s32 %v391, %v397
        %vm400 = vc.u32 %v398, %v394
        %v401 = vsel %vm400, 1, 0
        %v402 = vadd.s32 %v398, %v394
        %v403 = vadd.s32 %v399, %v401
        %v404 = vadd.s32 %v403, %v393
        %v405 = vadd.s32 %v404, %v395
        %v406 = vand.u32 %v383, 65535
        %v407 = vshrl.u32 %v383, 16
        %v408 = vand.u32 %v378, 65535
        %v409 = vshrl.u32 %v378, 16
        %v410 = vmul.u32 %v406, %v408
        %v411 = vmul.u32 %v406, %v409
        %v412 = vmul.u32 %v407, %v408
        %v413 = vmul.u32 %v407, %v409
        %v414 = vshll.u32 %v411, 16
        %v415 = vshrl.u32 %v411, 16
        %v416 = vshll.u32 %v412, 16
        %v417 = vshrl.u32 %v412, 16
        %vm418 = vc.u32 %v410, %v414
        %v419 = vsel %vm418, 1, 0
        %v420 = vadd.s32 %v410, %v414
        %v421 = vadd.s32 %v413, %v419
        %vm422 = vc.u32 %v420, %v416
        %v423 = vsel %vm422, 1, 0
        %v424 = vadd.s32 %v420, %v416
        %v425 = vadd.s32 %v421, %v423
        %v426 = vadd.s32 %v425, %v415
        %v427 = vadd.s32 %v426, %v417
        %v428 = vmul.u32 %v383, %v374
        %v429 = vadd.s32 %v405, %v424
        %vm430 = vc.u32 %v405, %v424
        %v431 = vadd.s32 %v427, 1
        %v432 = vsel %vm430, %v431, %v427
        %v433 = vadd.s32 %v428, %v432
        %v434 = vadd.s32 %v433, 536870912
        %v435 = vshrl.u32 %v434, 30
        %v436 = vshll.u32 %v435, 30
        %v437 = vsub.s32 %v433, %v436
        %vm438 = vcmp.lt.s32.totalorder %v437, 0
        %v439 = vsub.s32 0, %v437
        %v440 = vsel %vm438, %v439, %v437
        %v441 = vclz %v440
        %v442 = vsub.s32 %v441, 2
        %vm443 = vcmp.gt.s32.totalorder 0, %v442
        %v444 = vsel %vm443, 0, %v442
        %v445 = vsub.s32 32, %v444
        %v446 = vshll.u32 %v437, %v444
        %v447 = vshrl.u32 %v429, %v445
        %v448 = vor.u32 %v446, %v447
        %v449 = vsub.s32 4294967266, %v444
        %v450 = vadd.s32 %v449, 127
        %v451 = vshll.u32 %v450, 23
        %v452 = vor.u32 4788187, %v451
        %v453 = vand.u32 2147483647, %v452
        %v455 = vcvt.s32.f32 %v448
        %v456 = vmul.f32 %v455, %v453
        %v457 = vxor.u32 %v456, 2147483648
        %v458 = vsel %vm337, %v457, %v456
        %v459 = vsub.s32 4, %v435
        %v460 = vsel %vm337, %v459, %v435
        %v461 = vsel %vm336, %v179, %v458
        %v462 = vsel %vm336, 0, %v460
        %v463 = vmul.f32 %v461, %v461
        %v464 = vmul.f32 %v463, -0.001358992
        %v465 = vadd.f32 %v464, 0.041655596
        %v466 = vmul.f32 %v463, %v465
        %v467 = vadd.f32 %v466, -0.4999988
        %v468 = vmul.f32 %v463, %v467
        %v469 = vadd.f32 1.0, %v468
        %v470 = vmul.f32 %v461, %v461
        %v471 = vmul.f32 %v470, -0.00019511016
        %v472 = vadd.f32 %v471, 0.008332121
        %v473 = vmul.f32 %v470, %v472
        %v474 = vadd.f32 %v473, -0.16666654
        %v475 = vmul.f32 %v470, %v474
        %v476 = vadd.f32 %v475, 1.0
        %v477 = vmul.f32 %v476, %v461
        %vm478 = vweird.f32 %v179
        %v479 = vadd.s32 %v462, 3
        %v480 = vand.u32 %v479, 3
        %vm481 = vcmp.lt.s32.totalorder %v480, 2
        %vm482 = vcmp.eq.s32.totalorder %v480, 0
        %v483 = vxor.u32 %v477, 2147483648
        %v484 = vsel %vm482, %v469, %v483
        %vm485 = vcmp.eq.s32.totalorder %v480, 2
        %v486 = vxor.u32 %v469, 2147483648
        %v487 = vsel %vm485, %v486, %v477
        %v488 = vsel %vm481, %v484, %v487
        %v489 = vsel %vm478, nan, %v488
        %v490 = vld [vmem:[%s135] sm:$0xff]
        %v491 = vld [vmem:[%s135 + $0x8] sm:$0xff]
        %v492 = vadd.f32 %v490, %v334
        %v493 = vadd.f32 %v491, %v489
        %494 = vst [vmem:[%s154] sm:$0xff] %v492
        %495 = vst [vmem:[%s154 + $0x8] sm:$0xff] %v493
        %s496 = sand.u32 %s68, 1
        %s497 = scalar_lea.sflag [#allocation4], %s496
        %s498 = sand.u32 %s68, 1
        %s499 = smul.addr %s498, 16
        %s500 = scalar_lea.vmem [#allocation5], %s499
        // Predicated region
        $region29: #{tpu_custom_call.1} parent=23 // pred_check
          %p501 = pneg %p78
        $region30: #{tpu_custom_call.1} parent=23 // pred_check_branch
          %503 = sbr.rel (%p501) target = $region32
        $region31: #{tpu_custom_call.1} parent=23 // pred_region
          %s504 = smul.u32 2, %s23
          %506 = vsyncadd %s497, 0
          %s507 = smul.addr %s22, 2
          %s508 = sadd.s32 %s504, %s507
          %s509 = smul.addr %s508, 8
          %s510 = scalar_lea.hbm %s1, %s509
          %s511 = sshll.u32 %s500, 4
          %s512 = int_to_ptr.vmem [resolvable:$true] %s511
          %s513 = sshll.u32 %s510, 4
          %s514 = int_to_ptr.hbm [resolvable:$true] %s513
          %519 = dma.vmem_to_hbm [thread:$0]  %s512, 256, %s514, %s497, 128, 128, 8
        $region32: #{tpu_custom_call.1} parent=23 // pred_fallthru
          _
      $region24: #{tpu_custom_call.1} parent=5 // pred_fallthru
        _
      %p520 = scmp.le.s32.totalorder 2, %s13
      // Predicated region
      $region33: #{tpu_custom_call.1} parent=5 // pred_check
        %p521 = pneg %p520
      $region34: #{tpu_custom_call.1} parent=5 // pred_check_branch
        %523 = sbr.rel (%p521) target = $region36
      $region35: #{tpu_custom_call.1} parent=5 // pred_region
        %s524 = ssub.s32 %s13, 2
        // Predicated region
        $region37: #{tpu_custom_call.1} parent=35 // pred_check
          %p525 = pneg %p84
        $region38: #{tpu_custom_call.1} parent=35 // pred_check_branch
          %527 = sbr.rel (%p525) target = $region40
        $region39: #{tpu_custom_call.1} parent=35 // pred_region
          %s528 = sand.u32 %s69, 1
          %s529 = scalar_lea.sflag [#allocation4], %s528
          %s530 = sand.u32 %s69, 1
          %s531 = smul.addr %s530, 16
          %s532 = scalar_lea.vmem [#allocation5], %s531
          %534 = dma.done %s529, 256
        $region40: #{tpu_custom_call.1} parent=35 // pred_fallthru
          _
      $region36: #{tpu_custom_call.1} parent=5 // pred_fallthru
        _
    $region6: #{tpu_custom_call.1} parent=1 // loop_footer
      %s17 = sadd.s32 1, %s13
    $region7: #{tpu_custom_call.1} parent=1 // loop_footer_branch
      %12 = sbr.rel target = $region3
    $region8: #{tpu_custom_call.1} parent=1 // loop_exit
      _
    %535 = vsyncpa [#allocation3], 1
    %s536 = scalar_lea.sflag [#allocation3], 1
    %537 = vsyncpa %s536, 1
    %538 = vsyncpa [#allocation4], 1
    %s539 = scalar_lea.sflag [#allocation4], 1
    %540 = vsyncpa %s539, 1

// kernel: tpu_custom_call.1
$region0: #{tpu_custom_call.1}
  #allocation0 [shape = 'u32[]', space=smem, size = 0x4, offset = 0x4, fixed_abs, tag = 'smem constant byte address 0x4 - core index']
  #allocation1 [shape = 'u32[72,128]{1,0:T(1,128)}', space=vmem, size = 0x9000, scoped, tag = 'internal scratch']
  %s0 = inlined_call_operand.hbm [shape: f32[2,16,128], index: 0, kind: input, shape index: {}]
  %s1 = inlined_call_operand.hbm [shape: f32[1,64,128], index: 1, kind: input, shape index: {}]
  %s2 = inlined_call_operand.hbm [shape: f32[2,16,128], index: 2, kind: output, shape index: {}]
  %s3 = sld [smem:[#allocation0]]
  $region49: #{tpu_custom_call.1} parent=0
    _
  %s5 = ssub.s32 1, %s3
  %s6 = scalar_select 0, %s5, %s3
  $region1: #{tpu_custom_call.1} parent=0
    #allocation2 [shape = 'u8[16384]{0}', space=vmem, size = 0x4000, scoped, tag = 'input window, operand 0']
    #allocation3 [shape = 's32[2]{0}', space=sflag, size = 0x8, scoped, tag = 'scoped memory for tpu_custom_call.1']
    #allocation4 [shape = 's32[2]{0}', space=sflag, size = 0x8, scoped, tag = 'scoped memory for tpu_custom_call.1']
    #allocation5 [shape = 'u8[8192]{0}', space=vmem, size = 0x2000, scoped, tag = 'input window, operand 1, single buffered']
    #allocation6 [shape = 's32[1]{0}', space=sflag, size = 0x4, scoped, tag = 'scoped memory for tpu_custom_call.1']
    #allocation7 [shape = 'u8[16384]{0}', space=vmem, size = 0x4000, scoped, tag = 'output window, operand 0']
    %7 = vsyncpa [#allocation3], 0
    %s8 = scalar_lea.sflag [#allocation3], 1
    %9 = vsyncpa %s8, 0
    %10 = vsyncpa [#allocation6], 0
    %11 = vsyncpa [#allocation4], 0
    %s12 = scalar_lea.sflag [#allocation4], 1
    %13 = vsyncpa %s12, 0
    loop: start=0, step=1, limit=4
    $region2: #{tpu_custom_call.1} parent=1 // loop_pre_header
      _
    $region3: #{tpu_custom_call.1} parent=1 // loop_header
      %s15 = sphi 0, %s19
      %p16 = scmp.ge.s32.totalorder %s15, 4
      %s22 = sphi 0, %s34
      %s23 = sphi 0, %s30
      %s24 = sphi 0, %s22
      %s25 = sphi 0, %s23
      %s26 = sphi 0, %s24
      %s27 = sphi 0, %s25
      %s39 = sphi 0, %s41
      %s42 = sphi 0, %s39
      %s43 = sphi 0, %s42
      %s59 = sphi 0, %s43
      %s65 = sphi 0, %s67
      %s68 = sphi 0, %s65
      %s69 = sphi 0, %s68
      %s85 = sphi 0, %s69
      %s93 = sphi 0, %s95
      %s96 = sphi 0, %s93
      %s97 = sphi 0, %s96
      %s113 = sphi 0, %s97
    $region4: #{tpu_custom_call.1} parent=1 // loop_header_branch
      %18 = sbr.rel (%p16) target = $region8
    $region5: #{tpu_custom_call.1} parent=1 // loop_body
      %s20 = ssub.s32 %s15, 1
      %s21 = ssub.s32 %s15, 2
      %s28 = sadd.s32 1, %s23
      %p29 = scmp.ge.s32.totalorder %s28, 1
      %s30 = scalar_select %p29, 0, %s28
      %s31 = sadd.s32 1, %s22
      %s32 = scalar_select %p29, %s31, %s22
      %p33 = scmp.ge.s32.totalorder %s32, 2
      %s34 = scalar_select %p33, 0, %s32
      %s35 = ssub.s32 %s22, %s34
      %s36 = ssub.s32 %s23, %s30
      %s37 = sor.u32 %s35, %s36
      %p38 = scmp.eq.s32.totalorder %s37, 0
      %s40 = sadd.s32 %s39, 1
      %s41 = scalar_select %p38, %s39, %s40
      %p44 = pneg %p38
      %p45 = scmp.eq.s32.totalorder %s15, 1
      %p46 = por %p44, %p45
      %p47 = scmp.ne.s32.totalorder %s39, %s42
      %p48 = scmp.eq.s32.totalorder %s15, 0
      %p49 = por %p47, %p48
      %p50 = scmp.ne.s32.totalorder %s39, %s42
      %p51 = scmp.eq.s32.totalorder %s20, 1
      %p52 = por %p50, %p51
      %p53 = scmp.ne.s32.totalorder %s42, %s43
      %p54 = scmp.eq.s32.totalorder %s20, 0
      %p55 = por %p53, %p54
      %p56 = scmp.ne.s32.totalorder %s42, %s43
      %p57 = scmp.eq.s32.totalorder %s21, 1
      %p58 = por %p56, %p57
      %p60 = scmp.ne.s32.totalorder %s43, %s59
      %p61 = scmp.eq.s32.totalorder %s21, 0
      %p62 = por %p60, %p61
      %s63 = ssub.s32 %s23, %s30
      %p64 = scmp.eq.s32.totalorder %s63, 0
      %s66 = sadd.s32 %s65, 1
      %s67 = scalar_select %p64, %s65, %s66
      %p70 = pneg %p64
      %p71 = scmp.eq.s32.totalorder %s15, 1
      %p72 = por %p70, %p71
      %p73 = scmp.ne.s32.totalorder %s65, %s68
      %p74 = scmp.eq.s32.totalorder %s15, 0
      %p75 = por %p73, %p74
      %p76 = scmp.ne.s32.totalorder %s65, %s68
      %p77 = scmp.eq.s32.totalorder %s20, 1
      %p78 = por %p76, %p77
      %p79 = scmp.ne.s32.totalorder %s68, %s69
      %p80 = scmp.eq.s32.totalorder %s20, 0
      %p81 = por %p79, %p80
      %p82 = scmp.ne.s32.totalorder %s68, %s69
      %p83 = scmp.eq.s32.totalorder %s21, 1
      %p84 = por %p82, %p83
      %p86 = scmp.ne.s32.totalorder %s69, %s85
      %p87 = scmp.eq.s32.totalorder %s21, 0
      %p88 = por %p86, %p87
      %s89 = ssub.s32 %s22, %s34
      %s90 = ssub.s32 %s23, %s30
      %s91 = sor.u32 %s89, %s90
      %p92 = scmp.eq.s32.totalorder %s91, 0
      %s94 = sadd.s32 %s93, 1
      %s95 = scalar_select %p92, %s93, %s94
      %p98 = pneg %p92
      %p99 = scmp.eq.s32.totalorder %s15, 1
      %p100 = por %p98, %p99
      %p101 = scmp.ne.s32.totalorder %s93, %s96
      %p102 = scmp.eq.s32.totalorder %s15, 0
      %p103 = por %p101, %p102
      %p104 = scmp.ne.s32.totalorder %s93, %s96
      %p105 = scmp.eq.s32.totalorder %s20, 1
      %p106 = por %p104, %p105
      %p107 = scmp.ne.s32.totalorder %s96, %s97
      %p108 = scmp.eq.s32.totalorder %s20, 0
      %p109 = por %p107, %p108
      %p110 = scmp.ne.s32.totalorder %s96, %s97
      %p111 = scmp.eq.s32.totalorder %s21, 1
      %p112 = por %p110, %p111
      %p114 = scmp.ne.s32.totalorder %s97, %s113
      %p115 = scmp.eq.s32.totalorder %s21, 0
      %p116 = por %p114, %p115
      %p117 = scmp.le.s32.totalorder 1, %s15
      %p118 = scmp.lt.s32.totalorder %s15, 3
      %p119 = pnand %p117, %p118
      %p120 = pneg %p119
      // Predicated region
      $region9: #{tpu_custom_call.1} parent=5 // pred_check
        _
      $region10: #{tpu_custom_call.1} parent=5 // pred_check_branch
        %122 = sbr.rel (%p119) target = $region12
      $region11: #{tpu_custom_call.1} parent=5 // pred_region
        %s123 = ssub.s32 %s15, 1
        // Predicated region
        $region13: #{tpu_custom_call.1} parent=11 // pred_check
          %p124 = pneg %p81
        $region14: #{tpu_custom_call.1} parent=11 // pred_check_branch
          %126 = sbr.rel (%p124) target = $region16
        $region15: #{tpu_custom_call.1} parent=11 // pred_region
          %s127 = smul.u32 2, %s25
          %129 = vsyncadd [#allocation6], 0
          %s130 = smul.addr %s127, 8
          %s131 = scalar_lea.hbm %s1, %s130
          %s132 = sshll.u32 %s131, 4
          %s133 = int_to_ptr.hbm [resolvable:$true] %s132
          %s134 = sshll.u32 [#allocation5], 4
          %s135 = int_to_ptr.vmem [resolvable:$true] %s134
          %140 = dma.hbm_to_vmem [thread:$0]  %s133, 256, %s135, [#allocation6], 128, 128, 8
        $region16: #{tpu_custom_call.1} parent=11 // pred_fallthru
          _
      $region12: #{tpu_custom_call.1} parent=5 // pred_fallthru
        _
      %p141 = scmp.lt.s32.totalorder %s15, 2
      // Predicated region
      $region17: #{tpu_custom_call.1} parent=5 // pred_check
        %p142 = pneg %p141
      $region18: #{tpu_custom_call.1} parent=5 // pred_check_branch
        %144 = sbr.rel (%p142) target = $region20
      $region19: #{tpu_custom_call.1} parent=5 // pred_region
        // Predicated region
        $region21: #{tpu_custom_call.1} parent=19 // pred_check
          %p145 = pneg %p49
        $region22: #{tpu_custom_call.1} parent=19 // pred_check_branch
          %147 = sbr.rel (%p145) target = $region24
        $region23: #{tpu_custom_call.1} parent=19 // pred_region
          %s148 = sand.u32 %s39, 1
          %s149 = scalar_lea.sflag [#allocation3], %s148
          %s150 = sand.u32 %s39, 1
          %s151 = smul.addr %s150, 16
          %s152 = scalar_lea.vmem [#allocation2], %s151
          %s153 = smul.u32 2, %s23
          %155 = vsyncadd %s149, 0
          %s156 = smul.addr %s22, 2
          %s157 = sadd.s32 %s153, %s156
          %s158 = smul.addr %s157, 8
          %s159 = scalar_lea.hbm %s0, %s158
          %s160 = sshll.u32 %s159, 4
          %s161 = int_to_ptr.hbm [resolvable:$true] %s160
          %s162 = sshll.u32 %s152, 4
          %s163 = int_to_ptr.vmem [resolvable:$true] %s162
          %168 = dma.hbm_to_vmem [thread:$0]  %s161, 256, %s163, %s149, 128, 128, 8
        $region24: #{tpu_custom_call.1} parent=19 // pred_fallthru
          _
      $region20: #{tpu_custom_call.1} parent=5 // pred_fallthru
        _
      %p169 = scmp.le.s32.totalorder 1, %s15
      %p170 = scmp.lt.s32.totalorder %s15, 3
      %p171 = pnand %p169, %p170
      %p172 = pneg %p171
      // Predicated region
      $region25: #{tpu_custom_call.1} parent=5 // pred_check
        _
      $region26: #{tpu_custom_call.1} parent=5 // pred_check_branch
        %174 = sbr.rel (%p171) target = $region28
      $region27: #{tpu_custom_call.1} parent=5 // pred_region
        %s175 = ssub.s32 %s15, 1
        %s176 = sand.u32 %s42, 1
        %s177 = scalar_lea.sflag [#allocation3], %s176
        %s178 = sand.u32 %s42, 1
        %s179 = smul.addr %s178, 16
        %s180 = scalar_lea.vmem [#allocation2], %s179
        // Predicated region
        $region29: #{tpu_custom_call.1} parent=27 // pred_check
          %p181 = pneg %p55
        $region30: #{tpu_custom_call.1} parent=27 // pred_check_branch
          %183 = sbr.rel (%p181) target = $region32
        $region31: #{tpu_custom_call.1} parent=27 // pred_region
          %185 = dma.done %s177, 256
        $region32: #{tpu_custom_call.1} parent=27 // pred_fallthru
          _
        // Predicated region
        $region33: #{tpu_custom_call.1} parent=27 // pred_check
          %p186 = pneg %p81
        $region34: #{tpu_custom_call.1} parent=27 // pred_check_branch
          %188 = sbr.rel (%p186) target = $region36
        $region35: #{tpu_custom_call.1} parent=27 // pred_region
          %190 = dma.done [#allocation6], 256
        $region36: #{tpu_custom_call.1} parent=27 // pred_fallthru
          _
        %s191 = sand.u32 %s42, 1
        %s192 = scalar_lea.sflag [#allocation3], %s191
        %s193 = sand.u32 %s42, 1
        %s194 = smul.addr %s193, 16
        %s195 = scalar_lea.vmem [#allocation2], %s194
        %p196 = pneg %p55
        %p197 = pneg %p52
        %p198 = pneg %p81
        %p199 = pneg %p78
        %p200 = pneg %p109
        %p201 = pneg %p106
        %s202 = sand.u32 %s96, 1
        %s203 = scalar_lea.sflag [#allocation4], %s202
        %s204 = sand.u32 %s96, 1
        %s205 = smul.addr %s204, 16
        %s206 = scalar_lea.vmem [#allocation7], %s205
        %s207 = smul.u32 2, %s25
        %s208 = smul.u32 2, %s25
        %s209 = smul.u32 2, %s25
        %v210 = vld [vmem:[%s180] sm:$0xff]
        %v211 = vld [vmem:[%s180 + $0x8] sm:$0xff]
        %v212 = vld [vmem:[#allocation5] sm:$0xff]
        %v213 = vld [vmem:[#allocation5 + $0x8] sm:$0xff]
        %v214 = vadd.f32 %v210, %v212
        %v215 = vadd.f32 %v211, %v213
        %216 = vst [vmem:[%s206] sm:$0xff] %v214
        %217 = vst [vmem:[%s206 + $0x8] sm:$0xff] %v215
        %s218 = sand.u32 %s96, 1
        %s219 = scalar_lea.sflag [#allocation4], %s218
        %s220 = sand.u32 %s96, 1
        %s221 = smul.addr %s220, 16
        %s222 = scalar_lea.vmem [#allocation7], %s221
        // Predicated region
        $region37: #{tpu_custom_call.1} parent=27 // pred_check
          %p223 = pneg %p106
        $region38: #{tpu_custom_call.1} parent=27 // pred_check_branch
          %225 = sbr.rel (%p223) target = $region40
        $region39: #{tpu_custom_call.1} parent=27 // pred_region
          %s226 = smul.u32 2, %s25
          %228 = vsyncadd %s219, 0
          %s229 = smul.addr %s24, 2
          %s230 = sadd.s32 %s226, %s229
          %s231 = smul.addr %s230, 8
          %s232 = scalar_lea.hbm %s2, %s231
          %s233 = sshll.u32 %s222, 4
          %s234 = int_to_ptr.vmem [resolvable:$true] %s233
          %s235 = sshll.u32 %s232, 4
          %s236 = int_to_ptr.hbm [resolvable:$true] %s235
          %241 = dma.vmem_to_hbm [thread:$0]  %s234, 256, %s236, %s219, 128, 128, 8
        $region40: #{tpu_custom_call.1} parent=27 // pred_fallthru
          _
      $region28: #{tpu_custom_call.1} parent=5 // pred_fallthru
        _
      %p242 = scmp.le.s32.totalorder 2, %s15
      // Predicated region
      $region41: #{tpu_custom_call.1} parent=5 // pred_check
        %p243 = pneg %p242
      $region42: #{tpu_custom_call.1} parent=5 // pred_check_branch
        %245 = sbr.rel (%p243) target = $region44
      $region43: #{tpu_custom_call.1} parent=5 // pred_region
        %s246 = ssub.s32 %s15, 2
        // Predicated region
        $region45: #{tpu_custom_call.1} parent=43 // pred_check
          %p247 = pneg %p112
        $region46: #{tpu_custom_call.1} parent=43 // pred_check_branch
          %249 = sbr.rel (%p247) target = $region48
        $region47: #{tpu_custom_call.1} parent=43 // pred_region
          %s250 = sand.u32 %s97, 1
          %s251 = scalar_lea.sflag [#allocation4], %s250
          %s252 = sand.u32 %s97, 1
          %s253 = smul.addr %s252, 16
          %s254 = scalar_lea.vmem [#allocation7], %s253
          %256 = dma.done %s251, 256
        $region48: #{tpu_custom_call.1} parent=43 // pred_fallthru
          _
      $region44: #{tpu_custom_call.1} parent=5 // pred_fallthru
        _
    $region6: #{tpu_custom_call.1} parent=1 // loop_footer
      %s19 = sadd.s32 1, %s15
    $region7: #{tpu_custom_call.1} parent=1 // loop_footer_branch
      %14 = sbr.rel target = $region3
    $region8: #{tpu_custom_call.1} parent=1 // loop_exit
      _
    %257 = vsyncpa [#allocation3], 1
    %s258 = scalar_lea.sflag [#allocation3], 1
    %259 = vsyncpa %s258, 1
    %260 = vsyncpa [#allocation6], 1
    %261 = vsyncpa [#allocation4], 1
    %s262 = scalar_lea.sflag [#allocation4], 1
    %263 = vsyncpa %s262, 1

</llo_original>
